<compile_context>
chip_gen: v6e
topology: v6e:2x2x1
jax: 0.10.0
libtpu: 0.0.40
codegen_flags: <defaults>
</compile_context>

<pallas_src>
import jax
import jax.numpy as jnp
from jax.experimental import pallas as pl
from jax.experimental.pallas import tpu as pltpu

_LANE = 128  # TPU lane width; padded feature dimension.


def _round_up(x, m):
    return (x + m - 1) // m * m


def _joints_mlp_kernel(x_ref, w1_ref, b1_ref, w2_ref, b2_ref, w3_ref, b3_ref,
                       o_ref):
    x = x_ref[...]                     # (TB, J)    float32, J lanes only
    w1 = w1_ref[...]                   # (J, 128)   cols >= hidden are zero

    # Layer 1: K = joint_dim is tiny -> J VPU broadcast-FMAs instead of a
    # ~5%-full MXU pass; bias is folded into the accumulator initialization.
    h1 = b1_ref[...] + x[:, 0:1] * w1[0:1, :]            # (TB, 128)
    for k in range(1, w1.shape[0]):                      # static unroll over J
        h1 = h1 + x[:, k:k + 1] * w1[k:k + 1, :]
    h1 = jnp.maximum(h1, 0.0)

    # NOTE: nn.Dropout exists on the module but is never used in forward(),
    # so there is intentionally no dropout here.

    # Layer 2: Linear(32, 32) + ReLU (zero-padded to 128x128; pads are inert).
    h2 = jnp.dot(h1, w2_ref[...], preferred_element_type=jnp.float32)
    h2 = jnp.maximum(h2 + b2_ref[...], 0.0)

    # Layer 3: Linear(32, joint_dim), output padded to 128 lanes so the store
    # is lane-dense (unmasked vst).
    y = jnp.dot(h2, w3_ref[...], preferred_element_type=jnp.float32)
    o_ref[...] = y + b3_ref[...]


def prepare_params(params):
    """Zero-pad hidden / output feature dims to 128 lanes (do once, offline)."""
    joint_dim, hidden = params["w1"].shape

    def pad2d(a, shape):
        out = jnp.zeros(shape, jnp.float32)
        return out.at[:a.shape[0], :a.shape[1]].set(a.astype(jnp.float32))

    return {
        "w1": pad2d(params["w1"], (joint_dim, _LANE)),
        "b1": pad2d(params["b1"].reshape(1, hidden), (1, _LANE)),
        "w2": pad2d(params["w2"], (_LANE, _LANE)),
        "b2": pad2d(params["b2"].reshape(1, hidden), (1, _LANE)),
        "w3": pad2d(params["w3"], (_LANE, _LANE)),
        "b3": pad2d(params["b3"].reshape(1, joint_dim), (1, _LANE)),
    }


def joints_net_forward(pose_ins, padded_params):
    """Pallas implementation of JointsNet.forward.

    pose_ins: (B, joint_dim) float32
    padded_params: output of prepare_params().
    """
    B, joint_dim = pose_ins.shape
    assert padded_params["w1"].shape == (joint_dim, _LANE)

    # Batch tile: 512 (multiple of 256) fills v6e/v7x MXU rows and is 4x128 on
    # v5e; small batches get one round-up-to-8 tile.  VMEM use per tile is
    # ~TB*128*4 B + ~132 KB of resident weights, far below scoped limits.
    TB = 512 if B >= 512 else _round_up(B, 8)
    B_pad = _round_up(B, TB)

    x = pose_ins
    if B_pad != B:
        x = jnp.pad(x, ((0, B_pad - B), (0, 0)))

    resident = lambda shape: pl.BlockSpec(shape, lambda i: (0, 0))

    out = pl.pallas_call(
        _joints_mlp_kernel,
        out_shape=jax.ShapeDtypeStruct((B_pad, _LANE), jnp.float32),
        grid=(B_pad // TB,),
        in_specs=[
            pl.BlockSpec((TB, joint_dim), lambda i: (i, 0)),   # activations stream
            resident((joint_dim, _LANE)),                      # w1 (resident)
            resident((1, _LANE)),                              # b1
            resident((_LANE, _LANE)),                          # w2
            resident((1, _LANE)),                              # b2
            resident((_LANE, _LANE)),                          # w3
            resident((1, _LANE)),                              # b3
        ],
        out_specs=pl.BlockSpec((TB, _LANE), lambda i: (i, 0)),
        compiler_params=pltpu.CompilerParams(
            dimension_semantics=("parallel",)),
    )(x, padded_params["w1"], padded_params["b1"],
      padded_params["w2"], padded_params["b2"],
      padded_params["w3"], padded_params["b3"])

    return out[:B, :joint_dim]


def init_params(key, joint_dim=6, hidden_dim=32):
    """Deterministic synthetic parameters (shapes match the nn.Linear layers,
    stored as (in_features, out_features) = PyTorch weight.T)."""
    ks = jax.random.split(key, 6)
    scale = 0.1
    return {
        "w1": scale * jax.random.normal(ks[0], (joint_dim, hidden_dim), jnp.float32),
        "b1": scale * jax.random.normal(ks[1], (hidden_dim,), jnp.float32),
        "w2": scale * jax.random.normal(ks[2], (hidden_dim, hidden_dim), jnp.float32),
        "b2": scale * jax.random.normal(ks[3], (hidden_dim,), jnp.float32),
        "w3": scale * jax.random.normal(ks[4], (hidden_dim, joint_dim), jnp.float32),
        "b3": scale * jax.random.normal(ks[5], (joint_dim,), jnp.float32),
    }


def reference_forward(pose_ins, params):
    """Plain-JAX reference (mirrors the PyTorch forward exactly)."""
    h1 = jnp.maximum(pose_ins @ params["w1"] + params["b1"], 0.0)
    h2 = jnp.maximum(h1 @ params["w2"] + params["b2"], 0.0)
    return h2 @ params["w3"] + params["b3"]


if __name__ == "__main__":
    key = jax.random.PRNGKey(0)
    k_pose, k_param = jax.random.split(key, 2)

    B, joint_dim, hidden_dim = 2, 6, 32
    pose_ins = jax.random.normal(k_pose, (B, joint_dim), jnp.float32)
    params = init_params(k_param, joint_dim=joint_dim, hidden_dim=hidden_dim)
    padded_params = prepare_params(params)

    out = joints_net_forward(pose_ins, padded_params)
    out = jax.block_until_ready(out)

    ref = reference_forward(pose_ins, params)
    assert out.shape == (B, joint_dim), out.shape
    assert jnp.allclose(out, ref, atol=1e-5, rtol=1e-5), "mismatch vs reference"

    print("KERNEL_OK")
</pallas_src>

<mosaic_0001>
module attributes {stable_mosaic.version = 11 : i64} {
  func.func @_joints_mlp_kernel(%arg0: i32, %arg1: memref<8x6xf32, #tpu.memory_space<vmem>>, %arg2: memref<6x128xf32, #tpu.memory_space<vmem>>, %arg3: memref<1x128xf32, #tpu.memory_space<vmem>>, %arg4: memref<128x128xf32, #tpu.memory_space<vmem>>, %arg5: memref<1x128xf32, #tpu.memory_space<vmem>>, %arg6: memref<128x128xf32, #tpu.memory_space<vmem>>, %arg7: memref<1x128xf32, #tpu.memory_space<vmem>>, %arg8: memref<8x128xf32, #tpu.memory_space<vmem>>) attributes {dimension_semantics = [#tpu.dimension_semantics<parallel>], iteration_bounds = array<i64: 1>, scalar_prefetch = 0 : i64, scratch_operands = 0 : i64, tpu.core_type = #tpu.core_type<tc>, window_params = [{transform_indices = @transform_0, window_bounds = array<i64: 8, 6>}, {pipeline_mode = #tpu.pipeline_mode<synchronous>, transform_indices = @transform_1, window_bounds = array<i64: 6, 128>}, {pipeline_mode = #tpu.pipeline_mode<synchronous>, transform_indices = @transform_2, window_bounds = array<i64: 1, 128>}, {pipeline_mode = #tpu.pipeline_mode<synchronous>, transform_indices = @transform_3, window_bounds = array<i64: 128, 128>}, {pipeline_mode = #tpu.pipeline_mode<synchronous>, transform_indices = @transform_4, window_bounds = array<i64: 1, 128>}, {pipeline_mode = #tpu.pipeline_mode<synchronous>, transform_indices = @transform_5, window_bounds = array<i64: 128, 128>}, {pipeline_mode = #tpu.pipeline_mode<synchronous>, transform_indices = @transform_6, window_bounds = array<i64: 1, 128>}, {transform_indices = @transform_7, window_bounds = array<i64: 8, 128>}]} {
    %c0 = arith.constant 0 : index
    %c0_0 = arith.constant 0 : index
    %0 = vector.load %arg1[%c0, %c0_0] : memref<8x6xf32, #tpu.memory_space<vmem>>, vector<8x6xf32>
    %c0_1 = arith.constant 0 : index
    %c0_2 = arith.constant 0 : index
    %1 = vector.load %arg2[%c0_1, %c0_2] : memref<6x128xf32, #tpu.memory_space<vmem>>, vector<6x128xf32>
    %c0_3 = arith.constant 0 : index
    %c0_4 = arith.constant 0 : index
    %2 = vector.load %arg3[%c0_3, %c0_4] : memref<1x128xf32, #tpu.memory_space<vmem>>, vector<1x128xf32>
    %3 = vector.extract_strided_slice %0 {offsets = [0, 0], sizes = [8, 1], strides = [1, 1]} : vector<8x6xf32> to vector<8x1xf32>
    %4 = vector.extract_strided_slice %1 {offsets = [0, 0], sizes = [1, 128], strides = [1, 1]} : vector<6x128xf32> to vector<1x128xf32>
    %5 = vector.broadcast %3 : vector<8x1xf32> to vector<8x128xf32>
    %6 = vector.broadcast %4 : vector<1x128xf32> to vector<8x128xf32>
    %7 = arith.mulf %5, %6 : vector<8x128xf32>
    %8 = vector.broadcast %2 : vector<1x128xf32> to vector<8x128xf32>
    %9 = arith.addf %8, %7 : vector<8x128xf32>
    %10 = vector.extract_strided_slice %0 {offsets = [0, 1], sizes = [8, 1], strides = [1, 1]} : vector<8x6xf32> to vector<8x1xf32>
    %11 = vector.extract_strided_slice %1 {offsets = [1, 0], sizes = [1, 128], strides = [1, 1]} : vector<6x128xf32> to vector<1x128xf32>
    %12 = vector.broadcast %10 : vector<8x1xf32> to vector<8x128xf32>
    %13 = vector.broadcast %11 : vector<1x128xf32> to vector<8x128xf32>
    %14 = arith.mulf %12, %13 : vector<8x128xf32>
    %15 = arith.addf %9, %14 : vector<8x128xf32>
    %16 = vector.extract_strided_slice %0 {offsets = [0, 2], sizes = [8, 1], strides = [1, 1]} : vector<8x6xf32> to vector<8x1xf32>
    %17 = vector.extract_strided_slice %1 {offsets = [2, 0], sizes = [1, 128], strides = [1, 1]} : vector<6x128xf32> to vector<1x128xf32>
    %18 = vector.broadcast %16 : vector<8x1xf32> to vector<8x128xf32>
    %19 = vector.broadcast %17 : vector<1x128xf32> to vector<8x128xf32>
    %20 = arith.mulf %18, %19 : vector<8x128xf32>
    %21 = arith.addf %15, %20 : vector<8x128xf32>
    %22 = vector.extract_strided_slice %0 {offsets = [0, 3], sizes = [8, 1], strides = [1, 1]} : vector<8x6xf32> to vector<8x1xf32>
    %23 = vector.extract_strided_slice %1 {offsets = [3, 0], sizes = [1, 128], strides = [1, 1]} : vector<6x128xf32> to vector<1x128xf32>
    %24 = vector.broadcast %22 : vector<8x1xf32> to vector<8x128xf32>
    %25 = vector.broadcast %23 : vector<1x128xf32> to vector<8x128xf32>
    %26 = arith.mulf %24, %25 : vector<8x128xf32>
    %27 = arith.addf %21, %26 : vector<8x128xf32>
    %28 = vector.extract_strided_slice %0 {offsets = [0, 4], sizes = [8, 1], strides = [1, 1]} : vector<8x6xf32> to vector<8x1xf32>
    %29 = vector.extract_strided_slice %1 {offsets = [4, 0], sizes = [1, 128], strides = [1, 1]} : vector<6x128xf32> to vector<1x128xf32>
    %30 = vector.broadcast %28 : vector<8x1xf32> to vector<8x128xf32>
    %31 = vector.broadcast %29 : vector<1x128xf32> to vector<8x128xf32>
    %32 = arith.mulf %30, %31 : vector<8x128xf32>
    %33 = arith.addf %27, %32 : vector<8x128xf32>
    %34 = vector.extract_strided_slice %0 {offsets = [0, 5], sizes = [8, 1], strides = [1, 1]} : vector<8x6xf32> to vector<8x1xf32>
    %35 = vector.extract_strided_slice %1 {offsets = [5, 0], sizes = [1, 128], strides = [1, 1]} : vector<6x128xf32> to vector<1x128xf32>
    %36 = vector.broadcast %34 : vector<8x1xf32> to vector<8x128xf32>
    %37 = vector.broadcast %35 : vector<1x128xf32> to vector<8x128xf32>
    %38 = arith.mulf %36, %37 : vector<8x128xf32>
    %39 = arith.addf %33, %38 : vector<8x128xf32>
    %cst = arith.constant 0.000000e+00 : f32
    %40 = vector.broadcast %cst : f32 to vector<8x128xf32>
    %41 = arith.maximumf %39, %40 : vector<8x128xf32>
    %c0_5 = arith.constant 0 : index
    %c0_6 = arith.constant 0 : index
    %42 = vector.load %arg4[%c0_5, %c0_6] : memref<128x128xf32, #tpu.memory_space<vmem>>, vector<128x128xf32>
    %cst_7 = arith.constant dense<0.000000e+00> : vector<8x128xf32>
    %43 = tpu.matmul %41, %42, %cst_7 {dimension_numbers = #tpu.dot_dimension_numbers<[1], [0], [0], [1], [0, 0, 1, 1], [], []>} : vector<8x128xf32>, vector<128x128xf32>, vector<8x128xf32> -> vector<8x128xf32>
    %c0_8 = arith.constant 0 : index
    %c0_9 = arith.constant 0 : index
    %44 = vector.load %arg5[%c0_8, %c0_9] : memref<1x128xf32, #tpu.memory_space<vmem>>, vector<1x128xf32>
    %45 = vector.broadcast %44 : vector<1x128xf32> to vector<8x128xf32>
    %46 = arith.addf %43, %45 : vector<8x128xf32>
    %cst_10 = arith.constant 0.000000e+00 : f32
    %47 = vector.broadcast %cst_10 : f32 to vector<8x128xf32>
    %48 = arith.maximumf %46, %47 : vector<8x128xf32>
    %c0_11 = arith.constant 0 : index
    %c0_12 = arith.constant 0 : index
    %49 = vector.load %arg6[%c0_11, %c0_12] : memref<128x128xf32, #tpu.memory_space<vmem>>, vector<128x128xf32>
    %cst_13 = arith.constant dense<0.000000e+00> : vector<8x128xf32>
    %50 = tpu.matmul %48, %49, %cst_13 {dimension_numbers = #tpu.dot_dimension_numbers<[1], [0], [0], [1], [0, 0, 1, 1], [], []>} : vector<8x128xf32>, vector<128x128xf32>, vector<8x128xf32> -> vector<8x128xf32>
    %c0_14 = arith.constant 0 : index
    %c0_15 = arith.constant 0 : index
    %51 = vector.load %arg7[%c0_14, %c0_15] : memref<1x128xf32, #tpu.memory_space<vmem>>, vector<1x128xf32>
    %52 = vector.broadcast %51 : vector<1x128xf32> to vector<8x128xf32>
    %53 = arith.addf %50, %52 : vector<8x128xf32>
    %c0_16 = arith.constant 0 : index
    %c0_17 = arith.constant 0 : index
    %54 = vector.load %arg8[%c0_16, %c0_17] : memref<8x128xf32, #tpu.memory_space<vmem>>, vector<8x128xf32>
    tpu.vector_store %arg8[%c0_16, %c0_17], %53 {strides = array<i32>} : memref<8x128xf32, #tpu.memory_space<vmem>>, vector<8x128xf32>,
    return
  }
  func.func @transform_0(%arg0: i32) -> (i32, i32) {
    %c0_i32 = arith.constant 0 : i32
    %c0_i32_0 = arith.constant 0 : i32
    return %arg0, %c0_i32 : i32, i32
  }
  func.func @transform_1(%arg0: i32) -> (i32, i32) {
    %c0_i32 = arith.constant 0 : i32
    %c0_i32_0 = arith.constant 0 : i32
    %c0_i32_1 = arith.constant 0 : i32
    return %c0_i32, %c0_i32_0 : i32, i32
  }
  func.func @transform_2(%arg0: i32) -> (i32, i32) {
    %c0_i32 = arith.constant 0 : i32
    %c0_i32_0 = arith.constant 0 : i32
    %c0_i32_1 = arith.constant 0 : i32
    return %c0_i32, %c0_i32_0 : i32, i32
  }
  func.func @transform_3(%arg0: i32) -> (i32, i32) {
    %c0_i32 = arith.constant 0 : i32
    %c0_i32_0 = arith.constant 0 : i32
    %c0_i32_1 = arith.constant 0 : i32
    return %c0_i32, %c0_i32_0 : i32, i32
  }
  func.func @transform_4(%arg0: i32) -> (i32, i32) {
    %c0_i32 = arith.constant 0 : i32
    %c0_i32_0 = arith.constant 0 : i32
    %c0_i32_1 = arith.constant 0 : i32
    return %c0_i32, %c0_i32_0 : i32, i32
  }
  func.func @transform_5(%arg0: i32) -> (i32, i32) {
    %c0_i32 = arith.constant 0 : i32
    %c0_i32_0 = arith.constant 0 : i32
    %c0_i32_1 = arith.constant 0 : i32
    return %c0_i32, %c0_i32_0 : i32, i32
  }
  func.func @transform_6(%arg0: i32) -> (i32, i32) {
    %c0_i32 = arith.constant 0 : i32
    %c0_i32_0 = arith.constant 0 : i32
    %c0_i32_1 = arith.constant 0 : i32
    return %c0_i32, %c0_i32_0 : i32, i32
  }
  func.func @transform_7(%arg0: i32) -> (i32, i32) {
    %c0_i32 = arith.constant 0 : i32
    %c0_i32_0 = arith.constant 0 : i32
    return %arg0, %c0_i32 : i32, i32
  }
}

</mosaic_0001>

<llo_original>
// kernel: tpu_custom_call.1
$region0: #{tpu_custom_call.1}
  #allocation0 [shape = 'u32[]', space=smem, size = 0x4, offset = 0x4, fixed_abs, tag = 'smem constant byte address 0x4 - core index']
  #allocation1 [shape = 'u32[144,128]{1,0:T(1,128)}', space=vmem, size = 0x12000, scoped, tag = 'internal scratch']
  %s0 = inlined_call_operand.hbm [shape: f32[8,6], index: 0, kind: input, shape index: {}]
  %s1 = inlined_call_operand.hbm [shape: f32[6,128], index: 1, kind: input, shape index: {}]
  %s2 = inlined_call_operand.vmem [shape: f32[1,128], index: 2, kind: input, shape index: {}]
  %s3 = inlined_call_operand.hbm [shape: f32[128,128], index: 3, kind: input, shape index: {}]
  %s4 = inlined_call_operand.vmem [shape: f32[1,128], index: 4, kind: input, shape index: {}]
  %s5 = inlined_call_operand.hbm [shape: f32[128,128], index: 5, kind: input, shape index: {}]
  %s6 = inlined_call_operand.vmem [shape: f32[1,128], index: 6, kind: input, shape index: {}]
  %s7 = inlined_call_operand.hbm [shape: f32[8,128], index: 7, kind: output, shape index: {}]
  %s8 = sld [smem:[#allocation0]]
  $region54: #{tpu_custom_call.1} parent=0
    _
  %s10 = ssub.s32 1, %s8
  %s11 = scalar_select 0, %s10, %s8
  $region1: #{tpu_custom_call.1} parent=0
    #allocation2 [shape = 'u8[4096]{0}', space=vmem, size = 0x1000, scoped, tag = 'input window, operand 0, single buffered']
    #allocation3 [shape = 's32[1]{0}', space=sflag, size = 0x4, scoped, tag = 'scoped memory for tpu_custom_call.1']
    #allocation4 [shape = 's32[1]{0}', space=sflag, size = 0x4, scoped, tag = 'scoped memory for tpu_custom_call.1']
    #allocation5 [shape = 'u8[4096]{0}', space=vmem, size = 0x1000, scoped, tag = 'input window, operand 1, single buffered']
    #allocation6 [shape = 's32[1]{0}', space=sflag, size = 0x4, scoped, tag = 'scoped memory for tpu_custom_call.1']
    #allocation7 [shape = 'u8[65536]{0}', space=vmem, size = 0x10000, scoped, tag = 'input window, operand 3, single buffered']
    #allocation8 [shape = 'u8[65536]{0}', space=vmem, size = 0x10000, scoped, tag = 'input window, operand 5, single buffered']
    #allocation9 [shape = 's32[1]{0}', space=sflag, size = 0x4, scoped, tag = 'scoped memory for tpu_custom_call.1']
    #allocation10 [shape = 'u8[4096]{0}', space=vmem, size = 0x1000, scoped, tag = 'output window, operand 0, single buffered']
    %12 = vsyncpa [#allocation3], 0
    %13 = vsyncpa [#allocation6], 0
    %14 = vsyncpa [#allocation9], 0
    %15 = vsyncpa [#allocation4], 0
    // Predicated region
    $region2: #{tpu_custom_call.1} parent=1 // pred_check
      _
    $region3: #{tpu_custom_call.1} parent=1 // pred_check_branch
      %17 = sbr.rel (0) target = $region5
    $region4: #{tpu_custom_call.1} parent=1 // pred_region
      %s19 = ssub.s32 128, 128
      %20 = vsyncadd [#allocation3], %s19
      %s22 = sshll.u32 [#allocation2], 4
      %s23 = int_to_ptr.vmem [resolvable:$true] %s22
      %25 = dma.hbm_to_vmem [thread:$0]  %s0, 128, %s23, [#allocation3]
    $region5: #{tpu_custom_call.1} parent=1 // pred_fallthru
      _
    // Predicated region
    $region6: #{tpu_custom_call.1} parent=1 // pred_check
      _
    $region7: #{tpu_custom_call.1} parent=1 // pred_check_branch
      %27 = sbr.rel (0) target = $region9
    $region8: #{tpu_custom_call.1} parent=1 // pred_region
      %s29 = ssub.s32 128, 128
      %30 = vsyncadd [#allocation6], %s29
      %s32 = sshll.u32 [#allocation5], 4
      %s33 = int_to_ptr.vmem [resolvable:$true] %s32
      %35 = dma.hbm_to_vmem [thread:$0]  %s1, 128, %s33, [#allocation6]
    $region9: #{tpu_custom_call.1} parent=1 // pred_fallthru
      _
    // Predicated region
    $region10: #{tpu_custom_call.1} parent=1 // pred_check
      _
    $region11: #{tpu_custom_call.1} parent=1 // pred_check_branch
      %37 = sbr.rel (0) target = $region13
    $region12: #{tpu_custom_call.1} parent=1 // pred_region
      _
    $region13: #{tpu_custom_call.1} parent=1 // pred_fallthru
      _
    // Predicated region
    $region14: #{tpu_custom_call.1} parent=1 // pred_check
      _
    $region15: #{tpu_custom_call.1} parent=1 // pred_check_branch
      %39 = sbr.rel (0) target = $region17
    $region16: #{tpu_custom_call.1} parent=1 // pred_region
      %s41 = ssub.s32 2048, 2048
      %42 = vsyncadd [#allocation6], %s41
      %s43 = sshll.u32 [#allocation7], 4
      %s44 = int_to_ptr.vmem [resolvable:$true] %s43
      %49 = dma.hbm_to_vmem [thread:$0]  %s3, 2048, %s44, [#allocation6], 128, 128, 8
    $region17: #{tpu_custom_call.1} parent=1 // pred_fallthru
      _
    // Predicated region
    $region18: #{tpu_custom_call.1} parent=1 // pred_check
      _
    $region19: #{tpu_custom_call.1} parent=1 // pred_check_branch
      %51 = sbr.rel (0) target = $region21
    $region20: #{tpu_custom_call.1} parent=1 // pred_region
      _
    $region21: #{tpu_custom_call.1} parent=1 // pred_fallthru
      _
    // Predicated region
    $region22: #{tpu_custom_call.1} parent=1 // pred_check
      _
    $region23: #{tpu_custom_call.1} parent=1 // pred_check_branch
      %53 = sbr.rel (0) target = $region25
    $region24: #{tpu_custom_call.1} parent=1 // pred_region
      %s55 = ssub.s32 2048, 2048
      %56 = vsyncadd [#allocation9], %s55
      %s57 = sshll.u32 [#allocation8], 4
      %s58 = int_to_ptr.vmem [resolvable:$true] %s57
      %63 = dma.hbm_to_vmem [thread:$0]  %s5, 2048, %s58, [#allocation9], 128, 128, 8
    $region25: #{tpu_custom_call.1} parent=1 // pred_fallthru
      _
    // Predicated region
    $region26: #{tpu_custom_call.1} parent=1 // pred_check
      _
    $region27: #{tpu_custom_call.1} parent=1 // pred_check_branch
      %65 = sbr.rel (0) target = $region29
    $region28: #{tpu_custom_call.1} parent=1 // pred_region
      _
    $region29: #{tpu_custom_call.1} parent=1 // pred_fallthru
      _
    // Predicated region
    $region30: #{tpu_custom_call.1} parent=1 // pred_check
      _
    $region31: #{tpu_custom_call.1} parent=1 // pred_check_branch
      %67 = sbr.rel (0) target = $region33
    $region32: #{tpu_custom_call.1} parent=1 // pred_region
      %68 = dma.done [#allocation3], 128
    $region33: #{tpu_custom_call.1} parent=1 // pred_fallthru
      _
    // Predicated region
    $region34: #{tpu_custom_call.1} parent=1 // pred_check
      _
    $region35: #{tpu_custom_call.1} parent=1 // pred_check_branch
      %70 = sbr.rel (0) target = $region37
    $region36: #{tpu_custom_call.1} parent=1 // pred_region
      %71 = dma.done [#allocation6], 128
    $region37: #{tpu_custom_call.1} parent=1 // pred_fallthru
      _
    // Predicated region
    $region38: #{tpu_custom_call.1} parent=1 // pred_check
      _
    $region39: #{tpu_custom_call.1} parent=1 // pred_check_branch
      %73 = sbr.rel (0) target = $region41
    $region40: #{tpu_custom_call.1} parent=1 // pred_region
      %74 = dma.done [#allocation6], 2048
    $region41: #{tpu_custom_call.1} parent=1 // pred_fallthru
      _
    // Predicated region
    $region42: #{tpu_custom_call.1} parent=1 // pred_check
      _
    $region43: #{tpu_custom_call.1} parent=1 // pred_check_branch
      %76 = sbr.rel (0) target = $region45
    $region44: #{tpu_custom_call.1} parent=1 // pred_region
      %77 = dma.done [#allocation9], 2048
    $region45: #{tpu_custom_call.1} parent=1 // pred_fallthru
      _
    %v78 = vld [vmem:[#allocation2] sm:$0xff]
    %v79 = vld [vmem:[#allocation5] sm:$0x3f]
    %v80 = vld [vmem:[%s2] sm:$0x1]
    %82 = vset.pattern.permute.xlu0 0
    %83 = vperm.xlu0 %82, %v78
    %v84 = vpop.permute.xlu0 %83
    %v86 = vlaneseq
    %v87 = vshrl.u32 %v86, 7
    %v88 = vsub.s32 0, %v87
    %v89 = vrot.slane %v79, %v88
    %v90 = vmul.f32 %v84, %v89
    %v92 = vlaneseq
    %v93 = vshrl.u32 %v92, 7
    %v94 = vsub.s32 0, %v93
    %v95 = vrot.slane %v80, %v94
    %v97 = vadd.f32 %v95, %v90
    %98 = vset.pattern.permute.xlu0 1
    %99 = vperm.xlu0 %98, %v78
    %v100 = vpop.permute.xlu0 %99
    %v102 = vlaneseq
    %v103 = vshrl.u32 %v102, 7
    %v104 = vsub.s32 1, %v103
    %v105 = vrot.slane %v79, %v104
    %v106 = vmul.f32 %v100, %v105
    %v107 = vadd.f32 %v97, %v106
    %108 = vset.pattern.permute.xlu0 2
    %109 = vperm.xlu0 %108, %v78
    %v110 = vpop.permute.xlu0 %109
    %v112 = vlaneseq
    %v113 = vshrl.u32 %v112, 7
    %v114 = vsub.s32 2, %v113
    %v115 = vrot.slane %v79, %v114
    %v116 = vmul.f32 %v110, %v115
    %v117 = vadd.f32 %v107, %v116
    %118 = vset.pattern.permute.xlu0 3
    %119 = vperm.xlu0 %118, %v78
    %v120 = vpop.permute.xlu0 %119
    %v122 = vlaneseq
    %v123 = vshrl.u32 %v122, 7
    %v124 = vsub.s32 3, %v123
    %v125 = vrot.slane %v79, %v124
    %v126 = vmul.f32 %v120, %v125
    %v127 = vadd.f32 %v117, %v126
    %128 = vset.pattern.permute.xlu0 4
    %129 = vperm.xlu0 %128, %v78
    %v130 = vpop.permute.xlu0 %129
    %v132 = vlaneseq
    %v133 = vshrl.u32 %v132, 7
    %v134 = vsub.s32 4, %v133
    %v135 = vrot.slane %v79, %v134
    %v136 = vmul.f32 %v130, %v135
    %v137 = vadd.f32 %v127, %v136
    %138 = vset.pattern.permute.xlu0 5
    %139 = vperm.xlu0 %138, %v78
    %v140 = vpop.permute.xlu0 %139
    %v142 = vlaneseq
    %v143 = vshrl.u32 %v142, 7
    %v144 = vsub.s32 5, %v143
    %v145 = vrot.slane %v79, %v144
    %v146 = vmul.f32 %v140, %v145
    %v147 = vadd.f32 %v137, %v146
    %v148 = vmax.f32 %v147, 0.0
    %v149 = vld [vmem:[#allocation7] sm:$0xff]
    %v150 = vld [vmem:[#allocation7 + $0x8] sm:$0xff]
    %v151 = vld [vmem:[#allocation7 + $0x10] sm:$0xff]
    %v152 = vld [vmem:[#allocation7 + $0x18] sm:$0xff]
    %v153 = vld [vmem:[#allocation7 + $0x20] sm:$0xff]
    %v154 = vld [vmem:[#allocation7 + $0x28] sm:$0xff]
    %v155 = vld [vmem:[#allocation7 + $0x30] sm:$0xff]
    %v156 = vld [vmem:[#allocation7 + $0x38] sm:$0xff]
    %v157 = vld [vmem:[#allocation7 + $0x40] sm:$0xff]
    %v158 = vld [vmem:[#allocation7 + $0x48] sm:$0xff]
    %v159 = vld [vmem:[#allocation7 + $0x50] sm:$0xff]
    %v160 = vld [vmem:[#allocation7 + $0x58] sm:$0xff]
    %v161 = vld [vmem:[#allocation7 + $0x60] sm:$0xff]
    %v162 = vld [vmem:[#allocation7 + $0x68] sm:$0xff]
    %v163 = vld [vmem:[#allocation7 + $0x70] sm:$0xff]
    %v164 = vld [vmem:[#allocation7 + $0x78] sm:$0xff]
    %v165 = vld [vmem:[%s4] sm:$0x1]
    %v167 = vlaneseq
    %v168 = vshrl.u32 %v167, 7
    %v169 = vsub.s32 0, %v168
    %v170 = vrot.slane %v165, %v169
    %172 = vmatprep.subr.mxu0 0.0
    %173 = vmatpush1.msra.mxu0 %v164
    %174 = vmatprep.subr.mxu0 0.0
    %175 = vmatpush1.msra.mxu0 %v163
    %176 = vmatprep.subr.mxu0 0.0
    %177 = vmatpush1.msra.mxu0 %v162
    %178 = vmatprep.subr.mxu0 0.0
    %179 = vmatpush1.msra.mxu0 %v161
    %180 = vmatprep.subr.mxu0 0.0
    %181 = vmatpush1.msra.mxu0 %v160
    %182 = vmatprep.subr.mxu0 0.0
    %183 = vmatpush1.msra.mxu0 %v159
    %184 = vmatprep.subr.mxu0 0.0
    %185 = vmatpush1.msra.mxu0 %v158
    %186 = vmatprep.subr.mxu0 0.0
    %187 = vmatpush1.msra.mxu0 %v157
    %188 = vmatprep.subr.mxu0 0.0
    %189 = vmatpush1.msra.mxu0 %v156
    %190 = vmatprep.subr.mxu0 0.0
    %191 = vmatpush1.msra.mxu0 %v155
    %192 = vmatprep.subr.mxu0 0.0
    %193 = vmatpush1.msra.mxu0 %v154
    %194 = vmatprep.subr.mxu0 0.0
    %195 = vmatpush1.msra.mxu0 %v153
    %196 = vmatprep.subr.mxu0 0.0
    %197 = vmatpush1.msra.mxu0 %v152
    %198 = vmatprep.subr.mxu0 0.0
    %199 = vmatpush1.msra.mxu0 %v151
    %200 = vmatprep.subr.mxu0 0.0
    %201 = vmatpush1.msra.mxu0 %v150
    %202 = vmatprep.subr.mxu0 0.0
    %203 = vmatpush1.msra.mxu0 %v149
    %204 = vmatprep.subr.mxu0 0.0
    %205 = vmatpush2.msra.mxu0 0.0
    %206 = vmatprep.subr.mxu0 0.0
    %207 = vmatpush2.msra.mxu0 0.0
    %208 = vmatprep.subr.mxu0 0.0
    %209 = vmatpush2.msra.mxu0 0.0
    %210 = vmatprep.subr.mxu0 0.0
    %211 = vmatpush2.msra.mxu0 0.0
    %212 = vmatprep.subr.mxu0 0.0
    %213 = vmatpush2.msra.mxu0 0.0
    %214 = vmatprep.subr.mxu0 0.0
    %215 = vmatpush2.msra.mxu0 0.0
    %216 = vmatprep.subr.mxu0 0.0
    %217 = vmatpush2.msra.mxu0 0.0
    %218 = vmatprep.subr.mxu0 0.0
    %219 = vmatpush2.msra.mxu0 0.0
    %220 = vmatprep.subr.mxu0 0.0
    %221 = vmatpush2.msra.mxu0 0.0
    %222 = vmatprep.subr.mxu0 0.0
    %223 = vmatpush2.msra.mxu0 0.0
    %224 = vmatprep.subr.mxu0 0.0
    %225 = vmatpush2.msra.mxu0 0.0
    %226 = vmatprep.subr.mxu0 0.0
    %227 = vmatpush2.msra.mxu0 0.0
    %228 = vmatprep.subr.mxu0 0.0
    %229 = vmatpush2.msra.mxu0 0.0
    %230 = vmatprep.subr.mxu0 0.0
    %231 = vmatpush2.msra.mxu0 0.0
    %232 = vmatprep.subr.mxu0 0.0
    %233 = vmatpush2.msra.mxu0 0.0
    %234 = vmatprep.subr.mxu0 0.0
    %235 = vmatpush2.msra.mxu0 0.0
    %236 = vmatprep.mubr.f32.mxu0 0.0
    %237 = vmatmul.mubr.f32.gmra.mxu0 %v148
    %v238 = vpop.f32.mrf.mxu0
    %v239 = vadd.f32 %v170, %v238
    %v240 = vpop.f32.mrf.mxu0
    %241 = vdwg.mxu0
    %v242 = vmax.f32 %v239, 0.0
    %v243 = vld [vmem:[#allocation8] sm:$0xff]
    %v244 = vld [vmem:[#allocation8 + $0x8] sm:$0xff]
    %v245 = vld [vmem:[#allocation8 + $0x10] sm:$0xff]
    %v246 = vld [vmem:[#allocation8 + $0x18] sm:$0xff]
    %v247 = vld [vmem:[#allocation8 + $0x20] sm:$0xff]
    %v248 = vld [vmem:[#allocation8 + $0x28] sm:$0xff]
    %v249 = vld [vmem:[#allocation8 + $0x30] sm:$0xff]
    %v250 = vld [vmem:[#allocation8 + $0x38] sm:$0xff]
    %v251 = vld [vmem:[#allocation8 + $0x40] sm:$0xff]
    %v252 = vld [vmem:[#allocation8 + $0x48] sm:$0xff]
    %v253 = vld [vmem:[#allocation8 + $0x50] sm:$0xff]
    %v254 = vld [vmem:[#allocation8 + $0x58] sm:$0xff]
    %v255 = vld [vmem:[#allocation8 + $0x60] sm:$0xff]
    %v256 = vld [vmem:[#allocation8 + $0x68] sm:$0xff]
    %v257 = vld [vmem:[#allocation8 + $0x70] sm:$0xff]
    %v258 = vld [vmem:[#allocation8 + $0x78] sm:$0xff]
    %v259 = vld [vmem:[%s6] sm:$0x1]
    %v261 = vlaneseq
    %v262 = vshrl.u32 %v261, 7
    %v263 = vsub.s32 0, %v262
    %v264 = vrot.slane %v259, %v263
    %266 = vmatprep.subr.mxu0 0.0
    %267 = vmatpush1.msra.mxu0 %v258
    %268 = vmatprep.subr.mxu0 0.0
    %269 = vmatpush1.msra.mxu0 %v257
    %270 = vmatprep.subr.mxu0 0.0
    %271 = vmatpush1.msra.mxu0 %v256
    %272 = vmatprep.subr.mxu0 0.0
    %273 = vmatpush1.msra.mxu0 %v255
    %274 = vmatprep.subr.mxu0 0.0
    %275 = vmatpush1.msra.mxu0 %v254
    %276 = vmatprep.subr.mxu0 0.0
    %277 = vmatpush1.msra.mxu0 %v253
    %278 = vmatprep.subr.mxu0 0.0
    %279 = vmatpush1.msra.mxu0 %v252
    %280 = vmatprep.subr.mxu0 0.0
    %281 = vmatpush1.msra.mxu0 %v251
    %282 = vmatprep.subr.mxu0 0.0
    %283 = vmatpush1.msra.mxu0 %v250
    %284 = vmatprep.subr.mxu0 0.0
    %285 = vmatpush1.msra.mxu0 %v249
    %286 = vmatprep.subr.mxu0 0.0
    %287 = vmatpush1.msra.mxu0 %v248
    %288 = vmatprep.subr.mxu0 0.0
    %289 = vmatpush1.msra.mxu0 %v247
    %290 = vmatprep.subr.mxu0 0.0
    %291 = vmatpush1.msra.mxu0 %v246
    %292 = vmatprep.subr.mxu0 0.0
    %293 = vmatpush1.msra.mxu0 %v245
    %294 = vmatprep.subr.mxu0 0.0
    %295 = vmatpush1.msra.mxu0 %v244
    %296 = vmatprep.subr.mxu0 0.0
    %297 = vmatpush1.msra.mxu0 %v243
    %298 = vmatprep.subr.mxu0 0.0
    %299 = vmatpush2.msra.mxu0 0.0
    %300 = vmatprep.subr.mxu0 0.0
    %301 = vmatpush2.msra.mxu0 0.0
    %302 = vmatprep.subr.mxu0 0.0
    %303 = vmatpush2.msra.mxu0 0.0
    %304 = vmatprep.subr.mxu0 0.0
    %305 = vmatpush2.msra.mxu0 0.0
    %306 = vmatprep.subr.mxu0 0.0
    %307 = vmatpush2.msra.mxu0 0.0
    %308 = vmatprep.subr.mxu0 0.0
    %309 = vmatpush2.msra.mxu0 0.0
    %310 = vmatprep.subr.mxu0 0.0
    %311 = vmatpush2.msra.mxu0 0.0
    %312 = vmatprep.subr.mxu0 0.0
    %313 = vmatpush2.msra.mxu0 0.0
    %314 = vmatprep.subr.mxu0 0.0
    %315 = vmatpush2.msra.mxu0 0.0
    %316 = vmatprep.subr.mxu0 0.0
    %317 = vmatpush2.msra.mxu0 0.0
    %318 = vmatprep.subr.mxu0 0.0
    %319 = vmatpush2.msra.mxu0 0.0
    %320 = vmatprep.subr.mxu0 0.0
    %321 = vmatpush2.msra.mxu0 0.0
    %322 = vmatprep.subr.mxu0 0.0
    %323 = vmatpush2.msra.mxu0 0.0
    %324 = vmatprep.subr.mxu0 0.0
    %325 = vmatpush2.msra.mxu0 0.0
    %326 = vmatprep.subr.mxu0 0.0
    %327 = vmatpush2.msra.mxu0 0.0
    %328 = vmatprep.subr.mxu0 0.0
    %329 = vmatpush2.msra.mxu0 0.0
    %330 = vmatprep.mubr.f32.mxu0 0.0
    %331 = vmatmul.mubr.f32.gmra.mxu0 %v242
    %v332 = vpop.f32.mrf.mxu0
    %v333 = vadd.f32 %v264, %v332
    %v334 = vpop.f32.mrf.mxu0
    %335 = vdwg.mxu0
    %336 = vst [vmem:[#allocation10] sm:$0xff] %v333
    // Predicated region
    $region46: #{tpu_custom_call.1} parent=1 // pred_check
      _
    $region47: #{tpu_custom_call.1} parent=1 // pred_check_branch
      %338 = sbr.rel (0) target = $region49
    $region48: #{tpu_custom_call.1} parent=1 // pred_region
      %s340 = ssub.s32 128, 128
      %341 = vsyncadd [#allocation4], %s340
      %s343 = sshll.u32 [#allocation10], 4
      %s344 = int_to_ptr.vmem [resolvable:$true] %s343
      %346 = dma.vmem_to_hbm [thread:$0]  %s344, 128, %s7, [#allocation4]
    $region49: #{tpu_custom_call.1} parent=1 // pred_fallthru
      _
    // Predicated region
    $region50: #{tpu_custom_call.1} parent=1 // pred_check
      _
    $region51: #{tpu_custom_call.1} parent=1 // pred_check_branch
      %348 = sbr.rel (0) target = $region53
    $region52: #{tpu_custom_call.1} parent=1 // pred_region
      %349 = dma.done [#allocation4], 128
    $region53: #{tpu_custom_call.1} parent=1 // pred_fallthru
      _
    %350 = vsyncpa [#allocation3], 1
    %351 = vsyncpa [#allocation6], 1
    %352 = vsyncpa [#allocation9], 1
    %353 = vsyncpa [#allocation4], 1

</llo_original>
